<compile_context>
chip_gen: v5e
topology: v5e:2x2
jax: 0.10.0
libtpu: 0.0.40
codegen_flags: <defaults>
</compile_context>

<pallas_src>
import functools
import math

import jax
import jax.numpy as jnp
from jax.experimental import pallas as pl
from jax.experimental.pallas import tpu as pltpu


# -----------------------------------------------------------------------------
# Kernels
# -----------------------------------------------------------------------------
def _linear_kernel_f32_out(x_ref, w_ref, b_ref, o_ref):
    """f32 output: accumulate directly into the resident output block.

    x_ref: (tm, tk)   input rows
    w_ref: (tk, tn)   weight, already [in, out] layout (MXU-native)
    b_ref: (1,  tn)   f32 bias
    o_ref: (tm, tn)   f32 output block (resident across the K grid axis)
    """
    k = pl.program_id(2)

    @pl.when(k == 0)
    def _():
        o_ref[...] = jnp.broadcast_to(b_ref[...], o_ref.shape)

    o_ref[...] += jnp.dot(x_ref[...], w_ref[...],
                          preferred_element_type=jnp.float32)


def _linear_kernel_acc(x_ref, w_ref, b_ref, o_ref, acc_ref):
    """Non-f32 output: f32 scratch accumulator, bias-add + downcast at the end."""
    k = pl.program_id(2)

    @pl.when(k == 0)
    def _():
        acc_ref[...] = jnp.zeros_like(acc_ref)

    acc_ref[...] += jnp.dot(x_ref[...], w_ref[...],
                            preferred_element_type=jnp.float32)

    @pl.when(k == pl.num_programs(2) - 1)
    def _():
        o_ref[...] = (acc_ref[...] + b_ref[...]).astype(o_ref.dtype)


# -----------------------------------------------------------------------------
# Tile / VMEM planning
# -----------------------------------------------------------------------------
def _round_down(x, m):
    return max(m, (x // m) * m)


def _round_up(x, m):
    return ((x + m - 1) // m) * m


def _vmem_limit_bytes():
    """Generation-aware scoped-VMEM limit: 3/4 of physical VMEM, capped at 100 MiB.

    v7x (64 MiB physical) -> 48 MiB; v5e/v6e (128 MiB) -> 96 MiB.
    """
    try:
        cap = int(pltpu.get_tpu_info().vmem_capacity_bytes)
    except Exception:
        cap = 64 * 1024 * 1024  # conservative fallback (v7x per-TC VMEM)
    return min((cap * 3) // 4, 100 * 1024 * 1024)


def _block_bytes(tm, tn, tk, in_bytes, out_bytes, use_scratch):
    b = 2 * (tm * tk + tk * tn) * in_bytes   # double-buffered x and W tiles
    b += 2 * tm * tn * out_bytes             # double-buffered output tile
    b += 2 * tn * 4                          # bias tile (f32)
    if use_scratch:
        b += tm * tn * 4                     # f32 accumulator scratch
    return b


def _plan_tiles(M, N, K, in_bytes, out_bytes, use_scratch, budget,
                tm_want, tn_want, tk_want, sublane):
    tm = M if M <= tm_want else _round_down(tm_want, sublane)
    tn = N if N <= tn_want else _round_down(tn_want, 128)
    tk = K if K <= tk_want else _round_down(tk_want, 128)

    def fits():
        return _block_bytes(tm, tn, tk, in_bytes, out_bytes, use_scratch) <= budget

    # Shrink tk first (amortizes per-step overhead least), then tn, then tm.
    while not fits() and tk > 256 and tk % 256 == 0:
        tk //= 2
    while not fits() and tn > 256 and tn % 256 == 0:
        tn //= 2
    while not fits() and tm > 64 and tm % (2 * sublane) == 0:
        tm //= 2

    # Megacore / v7x dual-TC: keep >= 2 blocks along a parallel axis for
    # single-M-block (decode-like) shapes so the second core gets work.
    if pl.cdiv(M, tm) == 1 and pl.cdiv(N, tn) == 1 and N >= 256:
        tn_split = _round_up(max(N // 2, 128), 128)
        if tn_split < N:
            tn = tn_split

    return tm, tn, tk


# -----------------------------------------------------------------------------
# Wrapper
# -----------------------------------------------------------------------------
def prepare_weight(weight):
    """Convert a PyTorch-layout weight [out_features, in_features] to the
    MXU-native [in_features, out_features] layout. Do this ONCE at load time,
    not per forward call."""
    return jnp.transpose(jnp.asarray(weight))


@functools.partial(jax.jit, static_argnames=("tm", "tn", "tk", "compute_dtype"))
def linear_forward(x, weight_t, bias, *, tm=512, tn=1024, tk=1024,
                   compute_dtype=None):
    """y = x @ weight_t + bias  (== x @ W^T + b for PyTorch-layout W).

    x:        [M, K]
    weight_t: [K, N]   (pre-transposed weight, see `prepare_weight`)
    bias:     [N]
    compute_dtype: optional operand dtype for the matmul (e.g. jnp.bfloat16);
                   accumulation and bias-add stay f32, output keeps x's dtype.
    """
    M, K = x.shape
    K2, N = weight_t.shape
    assert K == K2, "in_features mismatch"
    assert bias.shape == (N,)

    out_dtype = x.dtype
    if compute_dtype is not None:
        x = x.astype(compute_dtype)
        weight_t = weight_t.astype(compute_dtype)

    in_bytes = jnp.dtype(x.dtype).itemsize
    out_bytes = jnp.dtype(out_dtype).itemsize
    use_scratch = out_dtype != jnp.float32
    sublane = {4: 8, 2: 16, 1: 32}.get(in_bytes, 8)

    vmem_limit = _vmem_limit_bytes()
    tm_eff, tn_eff, tk_eff = _plan_tiles(
        M, N, K, in_bytes, out_bytes, use_scratch,
        budget=(vmem_limit * 4) // 5,
        tm_want=tm, tn_want=tn, tk_want=tk, sublane=sublane)

    # Exact zero-padding of the contraction dim only (padded terms add 0);
    # partial edge blocks along M / N are handled by Pallas masked writeback.
    K_pad = pl.cdiv(K, tk_eff) * tk_eff
    if K_pad != K:
        x = jnp.pad(x, ((0, 0), (0, K_pad - K)))
        weight_t = jnp.pad(weight_t, ((0, K_pad - K), (0, 0)))

    grid = (pl.cdiv(M, tm_eff), pl.cdiv(N, tn_eff), K_pad // tk_eff)
    b2 = bias.reshape(1, N).astype(jnp.float32)

    kernel = _linear_kernel_acc if use_scratch else _linear_kernel_f32_out
    scratch = ([pltpu.VMEM((tm_eff, tn_eff), jnp.float32)]
               if use_scratch else [])

    out = pl.pallas_call(
        kernel,
        out_shape=jax.ShapeDtypeStruct((M, N), out_dtype),
        grid_spec=pltpu.PrefetchScalarGridSpec(
            num_scalar_prefetch=0,
            grid=grid,
            in_specs=[
                pl.BlockSpec((tm_eff, tk_eff), lambda i, j, k: (i, k)),  # x
                pl.BlockSpec((tk_eff, tn_eff), lambda i, j, k: (k, j)),  # W^T [K,N]
                pl.BlockSpec((1, tn_eff), lambda i, j, k: (0, j)),       # bias
            ],
            out_specs=pl.BlockSpec((tm_eff, tn_eff), lambda i, j, k: (i, j)),
            scratch_shapes=scratch,
        ),
        compiler_params=pltpu.CompilerParams(
            dimension_semantics=("parallel", "parallel", "arbitrary"),
            vmem_limit_bytes=vmem_limit,
        ),
    )(x, weight_t, b2)
    return out


def init_linear_params(key, in_features, out_features, dtype=jnp.float32):
    """Matches the PyTorch __init__: weight ~ U(-b, b) with
    b = sqrt(6 / (in_features + out_features)) in [out, in] layout; bias = 0."""
    b = math.sqrt(6.0 / (in_features + out_features))
    weight = jax.random.uniform(
        key, (out_features, in_features), dtype=dtype, minval=-b, maxval=b)
    bias = jnp.zeros((out_features,), dtype=dtype)
    return weight, bias


if __name__ == "__main__":
    key = jax.random.PRNGKey(0)
    k_x, k_w, k_x2, k_w2 = jax.random.split(key, 4)

    # --- Test 1: small shape matching the module's forward ------------------
    bsz, in_features, out_features = 16, 32, 64
    x = jax.random.normal(k_x, (bsz, in_features), dtype=jnp.float32)
    weight, bias = init_linear_params(k_w, in_features, out_features)
    weight_t = prepare_weight(weight)   # one-time layout conversion

    y = linear_forward(x, weight_t, bias)
    jax.block_until_ready(y)
    y_ref = x @ weight.T + bias
    assert y.shape == (bsz, out_features)
    assert jnp.allclose(y, y_ref, atol=2e-2, rtol=2e-2)

    # --- Test 2: multi-tile grid, partial M/N blocks, K padding path --------
    M2, K2, N2 = 40, 200, 384          # K=200 is not 128-divisible -> zero-pad
    x2 = jax.random.normal(k_x2, (M2, K2), dtype=jnp.float32)
    w2, b2 = init_linear_params(k_w2, K2, N2)
    b2 = b2 + 0.1
    w2_t = prepare_weight(w2)
    y2 = linear_forward(x2, w2_t, b2, tm=16, tn=128, tk=128)
    jax.block_until_ready(y2)
    y2_ref = x2 @ w2.T + b2
    assert y2.shape == (M2, N2)
    assert jnp.allclose(y2, y2_ref, atol=2e-2, rtol=2e-2)

    # --- Test 3: bf16 operand path (f32 accumulation, f32 output) -----------
    y3 = linear_forward(x2, w2_t, b2, compute_dtype=jnp.bfloat16)
    jax.block_until_ready(y3)
    assert jnp.allclose(y3, y2_ref, atol=1e-1, rtol=0)

    print("KERNEL_OK")
</pallas_src>

<mosaic_0001>
module attributes {stable_mosaic.version = 11 : i64} {
  func.func @_linear_kernel_f32_out(%arg0: i32, %arg1: i32, %arg2: i32, %arg3: memref<16x32xf32, #tpu.memory_space<vmem>>, %arg4: memref<32x64xf32, #tpu.memory_space<vmem>>, %arg5: memref<1x64xf32, #tpu.memory_space<vmem>>, %arg6: memref<16x64xf32, #tpu.memory_space<vmem>>) attributes {dimension_semantics = [#tpu.dimension_semantics<parallel>, #tpu.dimension_semantics<parallel>, #tpu.dimension_semantics<arbitrary>], iteration_bounds = array<i64: 1, 1, 1>, scalar_prefetch = 0 : i64, scratch_operands = 0 : i64, tpu.core_type = #tpu.core_type<tc>, window_params = [{transform_indices = @transform_0, window_bounds = array<i64: 16, 32>}, {transform_indices = @transform_1, window_bounds = array<i64: 32, 64>}, {transform_indices = @transform_2, window_bounds = array<i64: 1, 64>}, {transform_indices = @transform_3, window_bounds = array<i64: 16, 64>}]} {
    %c0_i32 = arith.constant 0 : i32
    %0 = arith.cmpi eq, %arg2, %c0_i32 : i32
    %1 = arith.extui %0 : i1 to i32
    %c0_i32_0 = arith.constant 0 : i32
    %2 = arith.cmpi ne, %1, %c0_i32_0 : i32
    scf.if %2 {
      %c0_8 = arith.constant 0 : index
      %c0_9 = arith.constant 0 : index
      %9 = vector.load %arg5[%c0_8, %c0_9] : memref<1x64xf32, #tpu.memory_space<vmem>>, vector<1x64xf32>
      %10 = vector.shape_cast %9 : vector<1x64xf32> to vector<1x64xf32>
      %11 = vector.broadcast %10 : vector<1x64xf32> to vector<16x64xf32>
      %c0_10 = arith.constant 0 : index
      %c0_11 = arith.constant 0 : index
      %12 = vector.load %arg6[%c0_10, %c0_11] : memref<16x64xf32, #tpu.memory_space<vmem>>, vector<16x64xf32>
      tpu.vector_store %arg6[%c0_10, %c0_11], %11 {strides = array<i32>} : memref<16x64xf32, #tpu.memory_space<vmem>>, vector<16x64xf32>,
    } else {
    }
    %c0 = arith.constant 0 : index
    %c0_1 = arith.constant 0 : index
    %3 = vector.load %arg6[%c0, %c0_1] : memref<16x64xf32, #tpu.memory_space<vmem>>, vector<16x64xf32>
    %c0_2 = arith.constant 0 : index
    %c0_3 = arith.constant 0 : index
    %4 = vector.load %arg3[%c0_2, %c0_3] : memref<16x32xf32, #tpu.memory_space<vmem>>, vector<16x32xf32>
    %c0_4 = arith.constant 0 : index
    %c0_5 = arith.constant 0 : index
    %5 = vector.load %arg4[%c0_4, %c0_5] : memref<32x64xf32, #tpu.memory_space<vmem>>, vector<32x64xf32>
    %cst = arith.constant dense<0.000000e+00> : vector<16x64xf32>
    %6 = tpu.matmul %4, %5, %cst {dimension_numbers = #tpu.dot_dimension_numbers<[1], [0], [0], [1], [0, 0, 1, 1], [], []>} : vector<16x32xf32>, vector<32x64xf32>, vector<16x64xf32> -> vector<16x64xf32>
    %7 = arith.addf %3, %6 : vector<16x64xf32>
    %c0_6 = arith.constant 0 : index
    %c0_7 = arith.constant 0 : index
    %8 = vector.load %arg6[%c0_6, %c0_7] : memref<16x64xf32, #tpu.memory_space<vmem>>, vector<16x64xf32>
    tpu.vector_store %arg6[%c0_6, %c0_7], %7 {strides = array<i32>} : memref<16x64xf32, #tpu.memory_space<vmem>>, vector<16x64xf32>,
    return
  }
  func.func @transform_0(%arg0: i32, %arg1: i32, %arg2: i32) -> (i32, i32) {
    %c0_i32 = arith.constant 0 : i32
    return %arg0, %arg2 : i32, i32
  }
  func.func @transform_1(%arg0: i32, %arg1: i32, %arg2: i32) -> (i32, i32) {
    %c0_i32 = arith.constant 0 : i32
    return %arg2, %arg1 : i32, i32
  }
  func.func @transform_2(%arg0: i32, %arg1: i32, %arg2: i32) -> (i32, i32) {
    %c0_i32 = arith.constant 0 : i32
    %c0_i32_0 = arith.constant 0 : i32
    return %c0_i32, %arg1 : i32, i32
  }
  func.func @transform_3(%arg0: i32, %arg1: i32, %arg2: i32) -> (i32, i32) {
    %c0_i32 = arith.constant 0 : i32
    return %arg0, %arg1 : i32, i32
  }
}

</mosaic_0001>

<llo_original>
// kernel: linear_forward.1
$region0: #{linear_forward.1}
  #allocation0 [shape = 'u32[]', space=smem, size = 0x4, offset = 0x4, fixed_abs, tag = 'smem constant byte address 0x4 - core index']
  #allocation1 [shape = 'u32[72,128]{1,0:T(1,128)}', space=vmem, size = 0x9000, scoped, tag = 'internal scratch']
  %s0 = inlined_call_operand.hbm [shape: f32[16,32], index: 0, kind: input, shape index: {}]
  %s1 = inlined_call_operand.hbm [shape: f32[32,64], index: 1, kind: input, shape index: {}]
  %s2 = inlined_call_operand.vmem [shape: f32[1,64], index: 2, kind: input, shape index: {}]
  %s3 = inlined_call_operand.hbm [shape: f32[16,64], index: 3, kind: output, shape index: {}]
  %s4 = sld [smem:[#allocation0]]
  $region34: #{linear_forward.1} parent=0
    _
  %s6 = ssub.s32 1, %s4
  %s7 = scalar_select 0, %s6, %s4
  $region1: #{linear_forward.1} parent=0
    #allocation2 [shape = 'u8[8192]{0}', space=vmem, size = 0x2000, scoped, tag = 'input window, operand 0, single buffered']
    #allocation3 [shape = 's32[1]{0}', space=sflag, size = 0x4, scoped, tag = 'scoped memory for linear_forward.1']
    #allocation4 [shape = 's32[1]{0}', space=sflag, size = 0x4, scoped, tag = 'scoped memory for linear_forward.1']
    #allocation5 [shape = 'u8[16384]{0}', space=vmem, size = 0x4000, scoped, tag = 'input window, operand 1, single buffered']
    #allocation6 [shape = 's32[1]{0}', space=sflag, size = 0x4, scoped, tag = 'scoped memory for linear_forward.1']
    #allocation7 [shape = 'u8[8192]{0}', space=vmem, size = 0x2000, scoped, tag = 'output window, operand 0, single buffered']
    %8 = vsyncpa [#allocation3], 0
    %9 = vsyncpa [#allocation6], 0
    %10 = vsyncpa [#allocation4], 0
    // Predicated region
    $region2: #{linear_forward.1} parent=1 // pred_check
      _
    $region3: #{linear_forward.1} parent=1 // pred_check_branch
      %12 = sbr.rel (0) target = $region5
    $region4: #{linear_forward.1} parent=1 // pred_region
      %14 = vsyncadd [#allocation3], 0
      %s15 = sshll.u32 %s0, 4
      %s16 = int_to_ptr.hbm [resolvable:$true] %s15
      %s17 = sshll.u32 [#allocation2], 4
      %s18 = int_to_ptr.vmem [resolvable:$true] %s17
      %23 = dma.hbm_to_vmem [thread:$0]  %s16, 256, %s18, [#allocation3], 128, 128, 8
    $region5: #{linear_forward.1} parent=1 // pred_fallthru
      _
    // Predicated region
    $region6: #{linear_forward.1} parent=1 // pred_check
      _
    $region7: #{linear_forward.1} parent=1 // pred_check_branch
      %25 = sbr.rel (0) target = $region9
    $region8: #{linear_forward.1} parent=1 // pred_region
      %27 = vsyncadd [#allocation6], 0
      %s28 = sshll.u32 %s1, 4
      %s29 = int_to_ptr.hbm [resolvable:$true] %s28
      %s30 = sshll.u32 [#allocation5], 4
      %s31 = int_to_ptr.vmem [resolvable:$true] %s30
      %36 = dma.hbm_to_vmem [thread:$0]  %s29, 512, %s31, [#allocation6], 128, 128, 8
    $region9: #{linear_forward.1} parent=1 // pred_fallthru
      _
    // Predicated region
    $region10: #{linear_forward.1} parent=1 // pred_check
      _
    $region11: #{linear_forward.1} parent=1 // pred_check_branch
      %38 = sbr.rel (0) target = $region13
    $region12: #{linear_forward.1} parent=1 // pred_region
      _
    $region13: #{linear_forward.1} parent=1 // pred_fallthru
      _
    // Predicated region
    $region14: #{linear_forward.1} parent=1 // pred_check
      _
    $region15: #{linear_forward.1} parent=1 // pred_check_branch
      %40 = sbr.rel (0) target = $region17
    $region16: #{linear_forward.1} parent=1 // pred_region
      %42 = dma.done [#allocation3], 256
    $region17: #{linear_forward.1} parent=1 // pred_fallthru
      _
    // Predicated region
    $region18: #{linear_forward.1} parent=1 // pred_check
      _
    $region19: #{linear_forward.1} parent=1 // pred_check_branch
      %44 = sbr.rel (0) target = $region21
    $region20: #{linear_forward.1} parent=1 // pred_region
      %46 = dma.done [#allocation6], 512
    $region21: #{linear_forward.1} parent=1 // pred_fallthru
      _
    %p47 = scmp.eq.s32.totalorder 0, 0
    // Predicated region
    $region22: #{linear_forward.1} parent=1 // pred_check
      %p48 = pneg %p47
    $region23: #{linear_forward.1} parent=1 // pred_check_branch
      %50 = sbr.rel (%p48) target = $region25
    $region24: #{linear_forward.1} parent=1 // pred_region
      %v51 = vld [vmem:[%s2] sm:$0x1]
      %v53 = vperm.slane %v51, 0
      %vm55 = vcmask 523264
      %56 = vst.msk [vmem:[#allocation7] sm:$0xff] %vm55, %v53
      %57 = vst.msk [vmem:[#allocation7 + $0x8] sm:$0xff] %vm55, %v53
    $region25: #{linear_forward.1} parent=1 // pred_fallthru
      _
    %v58 = vld [vmem:[#allocation7] sm:$0xff]
    %v59 = vld [vmem:[#allocation7 + $0x8] sm:$0xff]
    %v60 = vld [vmem:[#allocation2] sm:$0xff]
    %v61 = vld [vmem:[#allocation2 + $0x8] sm:$0xff]
    %v62 = vld [vmem:[#allocation5] sm:$0xff]
    %v63 = vld [vmem:[#allocation5 + $0x8] sm:$0xff]
    %v64 = vld [vmem:[#allocation5 + $0x10] sm:$0xff]
    %v65 = vld [vmem:[#allocation5 + $0x18] sm:$0xff]
    %vm66 = vcmask 261120
    %v68 = vsel %vm66, %v60, 0
    %v71 = vsel %vm66, %v61, 0
    %73 = vmatpush.msra.mxu0 0.0
    %74 = vmatpush.msra.mxu0 0.0
    %75 = vmatpush.msra.mxu0 0.0
    %76 = vmatpush.msra.mxu0 0.0
    %77 = vmatpush.msra.mxu0 0.0
    %78 = vmatpush.msra.mxu0 0.0
    %79 = vmatpush.msra.mxu0 0.0
    %80 = vmatpush.msra.mxu0 0.0
    %81 = vmatpush.msra.mxu0 0.0
    %82 = vmatpush.msra.mxu0 0.0
    %83 = vmatpush.msra.mxu0 0.0
    %84 = vmatpush.msra.mxu0 0.0
    %85 = vmatpush.msra.mxu0 %v65
    %86 = vmatpush.msra.mxu0 %v64
    %87 = vmatpush.msra.mxu0 %v63
    %88 = vmatpush.msra.mxu0 %v62
    %89 = vmatmul.f32.gmra.mxu0 %v68
    %v90 = vpop.f32.mrf.mxu0
    %v91 = vadd.f32 0.0, %v90
    %92 = vmatmul.f32.gmra.mxu0 %v71
    %v93 = vpop.f32.mrf.mxu0
    %v94 = vadd.f32 0.0, %v93
    %95 = vdwg.mxu0
    %v96 = vadd.f32 %v58, %v91
    %v97 = vadd.f32 %v59, %v94
    %vm98 = vcmask 523264
    %99 = vst.msk [vmem:[#allocation7] sm:$0xff] %vm98, %v96
    %100 = vst.msk [vmem:[#allocation7 + $0x8] sm:$0xff] %vm98, %v97
    // Predicated region
    $region26: #{linear_forward.1} parent=1 // pred_check
      _
    $region27: #{linear_forward.1} parent=1 // pred_check_branch
      %102 = sbr.rel (0) target = $region29
    $region28: #{linear_forward.1} parent=1 // pred_region
      %104 = vsyncadd [#allocation4], 0
      %s105 = sshll.u32 [#allocation7], 4
      %s106 = int_to_ptr.vmem [resolvable:$true] %s105
      %s107 = sshll.u32 %s3, 4
      %s108 = int_to_ptr.hbm [resolvable:$true] %s107
      %113 = dma.vmem_to_hbm [thread:$0]  %s106, 256, %s108, [#allocation4], 128, 128, 8
    $region29: #{linear_forward.1} parent=1 // pred_fallthru
      _
    // Predicated region
    $region30: #{linear_forward.1} parent=1 // pred_check
      _
    $region31: #{linear_forward.1} parent=1 // pred_check_branch
      %115 = sbr.rel (0) target = $region33
    $region32: #{linear_forward.1} parent=1 // pred_region
      %117 = dma.done [#allocation4], 256
    $region33: #{linear_forward.1} parent=1 // pred_fallthru
      _
    %118 = vsyncpa [#allocation3], 1
    %119 = vsyncpa [#allocation6], 1
    %120 = vsyncpa [#allocation4], 1

</llo_original>
